<compile_context>
chip_gen: v6e
topology: v6e:2x2x1
jax: 0.10.0
libtpu: 0.0.40
codegen_flags: <defaults>
</compile_context>

<pallas_src>
import functools

import jax
import jax.numpy as jnp
from jax.experimental import pallas as pl
from jax.experimental.pallas import tpu as pltpu


def _spatial_attention_kernel(x_ref, w_ref, row_ref, col_ref, o_ref, *, H, W):
    # x_ref:   (1, C, H*W)  one batch image, spatial flattened into lanes
    # w_ref:   (18,) SMEM   conv weights, layout [c, kh, kw], c in {avg, max}
    # row_ref: (1, H*W)     int32 spatial row index of each lane
    # col_ref: (1, H*W)     int32 spatial col index of each lane
    # o_ref:   (1, 1, H*W)  output attention map
    HW = H * W
    x = x_ref[0].astype(jnp.float32)                       # (C, HW)
    C = x.shape[0]

    avg = jnp.sum(x, axis=0, keepdims=True) * (1.0 / C)    # (1, HW)
    mx = jnp.max(x, axis=0, keepdims=True)                 # (1, HW)

    row = row_ref[...]                                     # (1, HW) int32
    col = col_ref[...]

    acc = jnp.zeros((1, HW), jnp.float32)
    k = 0
    for dh in (-1, 0, 1):
        for dw in (-1, 0, 1):
            # shifted[h, w] = plane[h + dh, w + dw]  (zero outside the image)
            shift = (-(dh * W + dw)) % HW
            if shift == 0:
                ra, rm = avg, mx
            else:
                ra = pltpu.roll(avg, shift=shift, axis=1)
                rm = pltpu.roll(mx, shift=shift, axis=1)
            valid = ((row + dh >= 0) & (row + dh < H) &
                     (col + dw >= 0) & (col + dw < W))
            ra = jnp.where(valid, ra, 0.0)
            rm = jnp.where(valid, rm, 0.0)
            acc = acc + w_ref[k] * ra + w_ref[9 + k] * rm
            k += 1

    o_ref[0] = jax.nn.sigmoid(acc).astype(o_ref.dtype)


def spatial_attention(x, conv_weight):
    """SpatialAttention forward. x: (N, C, H, W); conv_weight: (1, 2, 3, 3)."""
    N, C, H, W = x.shape
    assert conv_weight.shape == (1, 2, 3, 3)
    HW = H * W

    xf = x.reshape(N, C, HW)
    wf = conv_weight.reshape(-1).astype(jnp.float32)       # (18,)
    lane = jnp.arange(HW, dtype=jnp.int32)
    row = (lane // W).reshape(1, HW)
    col = (lane % W).reshape(1, HW)

    kernel = functools.partial(_spatial_attention_kernel, H=H, W=W)

    out = pl.pallas_call(
        kernel,
        out_shape=jax.ShapeDtypeStruct((N, 1, HW), x.dtype),
        grid_spec=pltpu.PrefetchScalarGridSpec(
            num_scalar_prefetch=0,
            grid=(N,),
            in_specs=[
                pl.BlockSpec((1, C, HW), lambda n: (n, 0, 0)),
                pl.BlockSpec(memory_space=pltpu.MemorySpace.SMEM),   # weights
                pl.BlockSpec((1, HW), lambda n: (0, 0)),             # row idx
                pl.BlockSpec((1, HW), lambda n: (0, 0)),             # col idx
            ],
            out_specs=pl.BlockSpec((1, 1, HW), lambda n: (n, 0, 0)),
        ),
        compiler_params=pltpu.CompilerParams(
            dimension_semantics=("parallel",),
        ),
    )(xf, wf, row, col)
    return out.reshape(N, 1, H, W)


if __name__ == "__main__":
    key = jax.random.PRNGKey(0)
    kx, kw = jax.random.split(key)
    x = jax.random.normal(kx, (2, 4, 16, 16), dtype=jnp.float32)
    w = jax.random.normal(kw, (1, 2, 3, 3), dtype=jnp.float32) * 0.1

    out = spatial_attention(x, w)
    jax.block_until_ready(out)

    # Pure-JAX reference (matches the PyTorch module's forward).
    avg = jnp.mean(x, axis=1, keepdims=True)
    mx = jnp.max(x, axis=1, keepdims=True)
    inp = jnp.concatenate([avg, mx], axis=1)               # (N, 2, H, W)
    ref = jax.lax.conv_general_dilated(
        inp, w, window_strides=(1, 1), padding="SAME",
        dimension_numbers=("NCHW", "OIHW", "NCHW"))
    ref = jax.nn.sigmoid(ref)

    assert out.shape == (2, 1, 16, 16), out.shape
    max_err = float(jnp.max(jnp.abs(out - ref)))
    assert jnp.allclose(out, ref, atol=1e-5, rtol=1e-5), max_err
    print("KERNEL_OK")
</pallas_src>

<mosaic_0001>
module attributes {stable_mosaic.version = 11 : i64} {
  func.func @_spatial_attention_kernel(%arg0: i32, %arg1: memref<1x4x256xf32, #tpu.memory_space<vmem>>, %arg2: memref<18xf32, #tpu.memory_space<smem>>, %arg3: memref<1x256xi32, #tpu.memory_space<vmem>>, %arg4: memref<1x256xi32, #tpu.memory_space<vmem>>, %arg5: memref<1x1x256xf32, #tpu.memory_space<vmem>>) attributes {dimension_semantics = [#tpu.dimension_semantics<parallel>], iteration_bounds = array<i64: 2>, scalar_prefetch = 0 : i64, scratch_operands = 0 : i64, tpu.core_type = #tpu.core_type<tc>, window_params = [{transform_indices = @transform_0, window_bounds = array<i64: 1, 4, 256>}, {transform_indices = @transform_1, window_bounds = array<i64: 18>}, {pipeline_mode = #tpu.pipeline_mode<synchronous>, transform_indices = @transform_2, window_bounds = array<i64: 1, 256>}, {pipeline_mode = #tpu.pipeline_mode<synchronous>, transform_indices = @transform_3, window_bounds = array<i64: 1, 256>}, {transform_indices = @transform_4, window_bounds = array<i64: 1, 1, 256>}]} {
    %c0 = arith.constant 0 : index
    %c0_0 = arith.constant 0 : index
    %c0_1 = arith.constant 0 : index
    %0 = vector.load %arg1[%c0, %c0_0, %c0_1] : memref<1x4x256xf32, #tpu.memory_space<vmem>>, vector<1x4x256xf32>
    %1 = vector.shape_cast %0 : vector<1x4x256xf32> to vector<4x256xf32>
    %cst = arith.constant dense<0.000000e+00> : vector<256xf32>
    %2 = vector.multi_reduction <add>, %1, %cst [0] : vector<4x256xf32> to vector<256xf32>
    %3 = vector.shape_cast %2 : vector<256xf32> to vector<1x256xf32>
    %cst_2 = arith.constant 2.500000e-01 : f32
    %4 = vector.broadcast %cst_2 : f32 to vector<1x256xf32>
    %5 = arith.mulf %3, %4 : vector<1x256xf32>
    %cst_3 = arith.constant dense<0xFF800000> : vector<256xf32>
    %6 = vector.multi_reduction <maximumf>, %1, %cst_3 [0] : vector<4x256xf32> to vector<256xf32>
    %7 = vector.shape_cast %6 : vector<256xf32> to vector<1x256xf32>
    %c0_4 = arith.constant 0 : index
    %c0_5 = arith.constant 0 : index
    %8 = vector.load %arg3[%c0_4, %c0_5] : memref<1x256xi32, #tpu.memory_space<vmem>>, vector<1x256xi32>
    %c0_6 = arith.constant 0 : index
    %c0_7 = arith.constant 0 : index
    %9 = vector.load %arg4[%c0_6, %c0_7] : memref<1x256xi32, #tpu.memory_space<vmem>>, vector<1x256xi32>
    %cst_8 = arith.constant 0.000000e+00 : f32
    %10 = vector.broadcast %cst_8 : f32 to vector<1x256xf32>
    %c17_i32 = arith.constant 17 : i32
    %11 = tpu.dynamic_rotate %5 by %c17_i32 dim 1 : vector<1x256xf32>, i32 -> vector<1x256xf32>
    %c17_i32_9 = arith.constant 17 : i32
    %12 = tpu.dynamic_rotate %7 by %c17_i32_9 dim 1 : vector<1x256xf32>, i32 -> vector<1x256xf32>
    %c-1_i32 = arith.constant -1 : i32
    %13 = vector.broadcast %c-1_i32 : i32 to vector<1x256xi32>
    %14 = arith.addi %8, %13 : vector<1x256xi32>
    %c0_i32 = arith.constant 0 : i32
    %15 = vector.broadcast %c0_i32 : i32 to vector<1x256xi32>
    %16 = arith.cmpi sge, %14, %15 : vector<1x256xi32>
    %c-1_i32_10 = arith.constant -1 : i32
    %17 = vector.broadcast %c-1_i32_10 : i32 to vector<1x256xi32>
    %18 = arith.addi %8, %17 : vector<1x256xi32>
    %c16_i32 = arith.constant 16 : i32
    %19 = vector.broadcast %c16_i32 : i32 to vector<1x256xi32>
    %20 = arith.cmpi slt, %18, %19 : vector<1x256xi32>
    %21 = arith.andi %16, %20 : vector<1x256xi1>
    %c-1_i32_11 = arith.constant -1 : i32
    %22 = vector.broadcast %c-1_i32_11 : i32 to vector<1x256xi32>
    %23 = arith.addi %9, %22 : vector<1x256xi32>
    %c0_i32_12 = arith.constant 0 : i32
    %24 = vector.broadcast %c0_i32_12 : i32 to vector<1x256xi32>
    %25 = arith.cmpi sge, %23, %24 : vector<1x256xi32>
    %26 = arith.andi %21, %25 : vector<1x256xi1>
    %c-1_i32_13 = arith.constant -1 : i32
    %27 = vector.broadcast %c-1_i32_13 : i32 to vector<1x256xi32>
    %28 = arith.addi %9, %27 : vector<1x256xi32>
    %c16_i32_14 = arith.constant 16 : i32
    %29 = vector.broadcast %c16_i32_14 : i32 to vector<1x256xi32>
    %30 = arith.cmpi slt, %28, %29 : vector<1x256xi32>
    %31 = arith.andi %26, %30 : vector<1x256xi1>
    %cst_15 = arith.constant 0.000000e+00 : f32
    %32 = vector.broadcast %cst_15 : f32 to vector<1x256xf32>
    %33 = arith.select %31, %11, %32 : vector<1x256xi1>, vector<1x256xf32>
    %cst_16 = arith.constant 0.000000e+00 : f32
    %34 = vector.broadcast %cst_16 : f32 to vector<1x256xf32>
    %35 = arith.select %31, %12, %34 : vector<1x256xi1>, vector<1x256xf32>
    %c0_17 = arith.constant 0 : index
    %36 = memref.load %arg2[%c0_17] : memref<18xf32, #tpu.memory_space<smem>>
    %37 = vector.broadcast %36 : f32 to vector<1x256xf32>
    %38 = arith.mulf %37, %33 : vector<1x256xf32>
    %39 = arith.addf %10, %38 : vector<1x256xf32>
    %c9 = arith.constant 9 : index
    %40 = memref.load %arg2[%c9] : memref<18xf32, #tpu.memory_space<smem>>
    %41 = vector.broadcast %40 : f32 to vector<1x256xf32>
    %42 = arith.mulf %41, %35 : vector<1x256xf32>
    %43 = arith.addf %39, %42 : vector<1x256xf32>
    %c16_i32_18 = arith.constant 16 : i32
    %44 = tpu.dynamic_rotate %5 by %c16_i32_18 dim 1 : vector<1x256xf32>, i32 -> vector<1x256xf32>
    %c16_i32_19 = arith.constant 16 : i32
    %45 = tpu.dynamic_rotate %7 by %c16_i32_19 dim 1 : vector<1x256xf32>, i32 -> vector<1x256xf32>
    %c-1_i32_20 = arith.constant -1 : i32
    %46 = vector.broadcast %c-1_i32_20 : i32 to vector<1x256xi32>
    %47 = arith.addi %8, %46 : vector<1x256xi32>
    %c0_i32_21 = arith.constant 0 : i32
    %48 = vector.broadcast %c0_i32_21 : i32 to vector<1x256xi32>
    %49 = arith.cmpi sge, %47, %48 : vector<1x256xi32>
    %c-1_i32_22 = arith.constant -1 : i32
    %50 = vector.broadcast %c-1_i32_22 : i32 to vector<1x256xi32>
    %51 = arith.addi %8, %50 : vector<1x256xi32>
    %c16_i32_23 = arith.constant 16 : i32
    %52 = vector.broadcast %c16_i32_23 : i32 to vector<1x256xi32>
    %53 = arith.cmpi slt, %51, %52 : vector<1x256xi32>
    %54 = arith.andi %49, %53 : vector<1x256xi1>
    %c0_i32_24 = arith.constant 0 : i32
    %55 = vector.broadcast %c0_i32_24 : i32 to vector<1x256xi32>
    %56 = arith.addi %9, %55 : vector<1x256xi32>
    %c0_i32_25 = arith.constant 0 : i32
    %57 = vector.broadcast %c0_i32_25 : i32 to vector<1x256xi32>
    %58 = arith.cmpi sge, %56, %57 : vector<1x256xi32>
    %59 = arith.andi %54, %58 : vector<1x256xi1>
    %c0_i32_26 = arith.constant 0 : i32
    %60 = vector.broadcast %c0_i32_26 : i32 to vector<1x256xi32>
    %61 = arith.addi %9, %60 : vector<1x256xi32>
    %c16_i32_27 = arith.constant 16 : i32
    %62 = vector.broadcast %c16_i32_27 : i32 to vector<1x256xi32>
    %63 = arith.cmpi slt, %61, %62 : vector<1x256xi32>
    %64 = arith.andi %59, %63 : vector<1x256xi1>
    %cst_28 = arith.constant 0.000000e+00 : f32
    %65 = vector.broadcast %cst_28 : f32 to vector<1x256xf32>
    %66 = arith.select %64, %44, %65 : vector<1x256xi1>, vector<1x256xf32>
    %cst_29 = arith.constant 0.000000e+00 : f32
    %67 = vector.broadcast %cst_29 : f32 to vector<1x256xf32>
    %68 = arith.select %64, %45, %67 : vector<1x256xi1>, vector<1x256xf32>
    %c1 = arith.constant 1 : index
    %69 = memref.load %arg2[%c1] : memref<18xf32, #tpu.memory_space<smem>>
    %70 = vector.broadcast %69 : f32 to vector<1x256xf32>
    %71 = arith.mulf %70, %66 : vector<1x256xf32>
    %72 = arith.addf %43, %71 : vector<1x256xf32>
    %c10 = arith.constant 10 : index
    %73 = memref.load %arg2[%c10] : memref<18xf32, #tpu.memory_space<smem>>
    %74 = vector.broadcast %73 : f32 to vector<1x256xf32>
    %75 = arith.mulf %74, %68 : vector<1x256xf32>
    %76 = arith.addf %72, %75 : vector<1x256xf32>
    %c15_i32 = arith.constant 15 : i32
    %77 = tpu.dynamic_rotate %5 by %c15_i32 dim 1 : vector<1x256xf32>, i32 -> vector<1x256xf32>
    %c15_i32_30 = arith.constant 15 : i32
    %78 = tpu.dynamic_rotate %7 by %c15_i32_30 dim 1 : vector<1x256xf32>, i32 -> vector<1x256xf32>
    %c-1_i32_31 = arith.constant -1 : i32
    %79 = vector.broadcast %c-1_i32_31 : i32 to vector<1x256xi32>
    %80 = arith.addi %8, %79 : vector<1x256xi32>
    %c0_i32_32 = arith.constant 0 : i32
    %81 = vector.broadcast %c0_i32_32 : i32 to vector<1x256xi32>
    %82 = arith.cmpi sge, %80, %81 : vector<1x256xi32>
    %c-1_i32_33 = arith.constant -1 : i32
    %83 = vector.broadcast %c-1_i32_33 : i32 to vector<1x256xi32>
    %84 = arith.addi %8, %83 : vector<1x256xi32>
    %c16_i32_34 = arith.constant 16 : i32
    %85 = vector.broadcast %c16_i32_34 : i32 to vector<1x256xi32>
    %86 = arith.cmpi slt, %84, %85 : vector<1x256xi32>
    %87 = arith.andi %82, %86 : vector<1x256xi1>
    %c1_i32 = arith.constant 1 : i32
    %88 = vector.broadcast %c1_i32 : i32 to vector<1x256xi32>
    %89 = arith.addi %9, %88 : vector<1x256xi32>
    %c0_i32_35 = arith.constant 0 : i32
    %90 = vector.broadcast %c0_i32_35 : i32 to vector<1x256xi32>
    %91 = arith.cmpi sge, %89, %90 : vector<1x256xi32>
    %92 = arith.andi %87, %91 : vector<1x256xi1>
    %c1_i32_36 = arith.constant 1 : i32
    %93 = vector.broadcast %c1_i32_36 : i32 to vector<1x256xi32>
    %94 = arith.addi %9, %93 : vector<1x256xi32>
    %c16_i32_37 = arith.constant 16 : i32
    %95 = vector.broadcast %c16_i32_37 : i32 to vector<1x256xi32>
    %96 = arith.cmpi slt, %94, %95 : vector<1x256xi32>
    %97 = arith.andi %92, %96 : vector<1x256xi1>
    %cst_38 = arith.constant 0.000000e+00 : f32
    %98 = vector.broadcast %cst_38 : f32 to vector<1x256xf32>
    %99 = arith.select %97, %77, %98 : vector<1x256xi1>, vector<1x256xf32>
    %cst_39 = arith.constant 0.000000e+00 : f32
    %100 = vector.broadcast %cst_39 : f32 to vector<1x256xf32>
    %101 = arith.select %97, %78, %100 : vector<1x256xi1>, vector<1x256xf32>
    %c2 = arith.constant 2 : index
    %102 = memref.load %arg2[%c2] : memref<18xf32, #tpu.memory_space<smem>>
    %103 = vector.broadcast %102 : f32 to vector<1x256xf32>
    %104 = arith.mulf %103, %99 : vector<1x256xf32>
    %105 = arith.addf %76, %104 : vector<1x256xf32>
    %c11 = arith.constant 11 : index
    %106 = memref.load %arg2[%c11] : memref<18xf32, #tpu.memory_space<smem>>
    %107 = vector.broadcast %106 : f32 to vector<1x256xf32>
    %108 = arith.mulf %107, %101 : vector<1x256xf32>
    %109 = arith.addf %105, %108 : vector<1x256xf32>
    %c1_i32_40 = arith.constant 1 : i32
    %110 = tpu.dynamic_rotate %5 by %c1_i32_40 dim 1 : vector<1x256xf32>, i32 -> vector<1x256xf32>
    %c1_i32_41 = arith.constant 1 : i32
    %111 = tpu.dynamic_rotate %7 by %c1_i32_41 dim 1 : vector<1x256xf32>, i32 -> vector<1x256xf32>
    %c0_i32_42 = arith.constant 0 : i32
    %112 = vector.broadcast %c0_i32_42 : i32 to vector<1x256xi32>
    %113 = arith.addi %8, %112 : vector<1x256xi32>
    %c0_i32_43 = arith.constant 0 : i32
    %114 = vector.broadcast %c0_i32_43 : i32 to vector<1x256xi32>
    %115 = arith.cmpi sge, %113, %114 : vector<1x256xi32>
    %c0_i32_44 = arith.constant 0 : i32
    %116 = vector.broadcast %c0_i32_44 : i32 to vector<1x256xi32>
    %117 = arith.addi %8, %116 : vector<1x256xi32>
    %c16_i32_45 = arith.constant 16 : i32
    %118 = vector.broadcast %c16_i32_45 : i32 to vector<1x256xi32>
    %119 = arith.cmpi slt, %117, %118 : vector<1x256xi32>
    %120 = arith.andi %115, %119 : vector<1x256xi1>
    %c-1_i32_46 = arith.constant -1 : i32
    %121 = vector.broadcast %c-1_i32_46 : i32 to vector<1x256xi32>
    %122 = arith.addi %9, %121 : vector<1x256xi32>
    %c0_i32_47 = arith.constant 0 : i32
    %123 = vector.broadcast %c0_i32_47 : i32 to vector<1x256xi32>
    %124 = arith.cmpi sge, %122, %123 : vector<1x256xi32>
    %125 = arith.andi %120, %124 : vector<1x256xi1>
    %c-1_i32_48 = arith.constant -1 : i32
    %126 = vector.broadcast %c-1_i32_48 : i32 to vector<1x256xi32>
    %127 = arith.addi %9, %126 : vector<1x256xi32>
    %c16_i32_49 = arith.constant 16 : i32
    %128 = vector.broadcast %c16_i32_49 : i32 to vector<1x256xi32>
    %129 = arith.cmpi slt, %127, %128 : vector<1x256xi32>
    %130 = arith.andi %125, %129 : vector<1x256xi1>
    %cst_50 = arith.constant 0.000000e+00 : f32
    %131 = vector.broadcast %cst_50 : f32 to vector<1x256xf32>
    %132 = arith.select %130, %110, %131 : vector<1x256xi1>, vector<1x256xf32>
    %cst_51 = arith.constant 0.000000e+00 : f32
    %133 = vector.broadcast %cst_51 : f32 to vector<1x256xf32>
    %134 = arith.select %130, %111, %133 : vector<1x256xi1>, vector<1x256xf32>
    %c3 = arith.constant 3 : index
    %135 = memref.load %arg2[%c3] : memref<18xf32, #tpu.memory_space<smem>>
    %136 = vector.broadcast %135 : f32 to vector<1x256xf32>
    %137 = arith.mulf %136, %132 : vector<1x256xf32>
    %138 = arith.addf %109, %137 : vector<1x256xf32>
    %c12 = arith.constant 12 : index
    %139 = memref.load %arg2[%c12] : memref<18xf32, #tpu.memory_space<smem>>
    %140 = vector.broadcast %139 : f32 to vector<1x256xf32>
    %141 = arith.mulf %140, %134 : vector<1x256xf32>
    %142 = arith.addf %138, %141 : vector<1x256xf32>
    %c0_i32_52 = arith.constant 0 : i32
    %143 = vector.broadcast %c0_i32_52 : i32 to vector<1x256xi32>
    %144 = arith.addi %8, %143 : vector<1x256xi32>
    %c0_i32_53 = arith.constant 0 : i32
    %145 = vector.broadcast %c0_i32_53 : i32 to vector<1x256xi32>
    %146 = arith.cmpi sge, %144, %145 : vector<1x256xi32>
    %c0_i32_54 = arith.constant 0 : i32
    %147 = vector.broadcast %c0_i32_54 : i32 to vector<1x256xi32>
    %148 = arith.addi %8, %147 : vector<1x256xi32>
    %c16_i32_55 = arith.constant 16 : i32
    %149 = vector.broadcast %c16_i32_55 : i32 to vector<1x256xi32>
    %150 = arith.cmpi slt, %148, %149 : vector<1x256xi32>
    %151 = arith.andi %146, %150 : vector<1x256xi1>
    %c0_i32_56 = arith.constant 0 : i32
    %152 = vector.broadcast %c0_i32_56 : i32 to vector<1x256xi32>
    %153 = arith.addi %9, %152 : vector<1x256xi32>
    %c0_i32_57 = arith.constant 0 : i32
    %154 = vector.broadcast %c0_i32_57 : i32 to vector<1x256xi32>
    %155 = arith.cmpi sge, %153, %154 : vector<1x256xi32>
    %156 = arith.andi %151, %155 : vector<1x256xi1>
    %c0_i32_58 = arith.constant 0 : i32
    %157 = vector.broadcast %c0_i32_58 : i32 to vector<1x256xi32>
    %158 = arith.addi %9, %157 : vector<1x256xi32>
    %c16_i32_59 = arith.constant 16 : i32
    %159 = vector.broadcast %c16_i32_59 : i32 to vector<1x256xi32>
    %160 = arith.cmpi slt, %158, %159 : vector<1x256xi32>
    %161 = arith.andi %156, %160 : vector<1x256xi1>
    %cst_60 = arith.constant 0.000000e+00 : f32
    %162 = vector.broadcast %cst_60 : f32 to vector<1x256xf32>
    %163 = arith.select %161, %5, %162 : vector<1x256xi1>, vector<1x256xf32>
    %cst_61 = arith.constant 0.000000e+00 : f32
    %164 = vector.broadcast %cst_61 : f32 to vector<1x256xf32>
    %165 = arith.select %161, %7, %164 : vector<1x256xi1>, vector<1x256xf32>
    %c4 = arith.constant 4 : index
    %166 = memref.load %arg2[%c4] : memref<18xf32, #tpu.memory_space<smem>>
    %167 = vector.broadcast %166 : f32 to vector<1x256xf32>
    %168 = arith.mulf %167, %163 : vector<1x256xf32>
    %169 = arith.addf %142, %168 : vector<1x256xf32>
    %c13 = arith.constant 13 : index
    %170 = memref.load %arg2[%c13] : memref<18xf32, #tpu.memory_space<smem>>
    %171 = vector.broadcast %170 : f32 to vector<1x256xf32>
    %172 = arith.mulf %171, %165 : vector<1x256xf32>
    %173 = arith.addf %169, %172 : vector<1x256xf32>
    %c255_i32 = arith.constant 255 : i32
    %174 = tpu.dynamic_rotate %5 by %c255_i32 dim 1 : vector<1x256xf32>, i32 -> vector<1x256xf32>
    %c255_i32_62 = arith.constant 255 : i32
    %175 = tpu.dynamic_rotate %7 by %c255_i32_62 dim 1 : vector<1x256xf32>, i32 -> vector<1x256xf32>
    %c0_i32_63 = arith.constant 0 : i32
    %176 = vector.broadcast %c0_i32_63 : i32 to vector<1x256xi32>
    %177 = arith.addi %8, %176 : vector<1x256xi32>
    %c0_i32_64 = arith.constant 0 : i32
    %178 = vector.broadcast %c0_i32_64 : i32 to vector<1x256xi32>
    %179 = arith.cmpi sge, %177, %178 : vector<1x256xi32>
    %c0_i32_65 = arith.constant 0 : i32
    %180 = vector.broadcast %c0_i32_65 : i32 to vector<1x256xi32>
    %181 = arith.addi %8, %180 : vector<1x256xi32>
    %c16_i32_66 = arith.constant 16 : i32
    %182 = vector.broadcast %c16_i32_66 : i32 to vector<1x256xi32>
    %183 = arith.cmpi slt, %181, %182 : vector<1x256xi32>
    %184 = arith.andi %179, %183 : vector<1x256xi1>
    %c1_i32_67 = arith.constant 1 : i32
    %185 = vector.broadcast %c1_i32_67 : i32 to vector<1x256xi32>
    %186 = arith.addi %9, %185 : vector<1x256xi32>
    %c0_i32_68 = arith.constant 0 : i32
    %187 = vector.broadcast %c0_i32_68 : i32 to vector<1x256xi32>
    %188 = arith.cmpi sge, %186, %187 : vector<1x256xi32>
    %189 = arith.andi %184, %188 : vector<1x256xi1>
    %c1_i32_69 = arith.constant 1 : i32
    %190 = vector.broadcast %c1_i32_69 : i32 to vector<1x256xi32>
    %191 = arith.addi %9, %190 : vector<1x256xi32>
    %c16_i32_70 = arith.constant 16 : i32
    %192 = vector.broadcast %c16_i32_70 : i32 to vector<1x256xi32>
    %193 = arith.cmpi slt, %191, %192 : vector<1x256xi32>
    %194 = arith.andi %189, %193 : vector<1x256xi1>
    %cst_71 = arith.constant 0.000000e+00 : f32
    %195 = vector.broadcast %cst_71 : f32 to vector<1x256xf32>
    %196 = arith.select %194, %174, %195 : vector<1x256xi1>, vector<1x256xf32>
    %cst_72 = arith.constant 0.000000e+00 : f32
    %197 = vector.broadcast %cst_72 : f32 to vector<1x256xf32>
    %198 = arith.select %194, %175, %197 : vector<1x256xi1>, vector<1x256xf32>
    %c5 = arith.constant 5 : index
    %199 = memref.load %arg2[%c5] : memref<18xf32, #tpu.memory_space<smem>>
    %200 = vector.broadcast %199 : f32 to vector<1x256xf32>
    %201 = arith.mulf %200, %196 : vector<1x256xf32>
    %202 = arith.addf %173, %201 : vector<1x256xf32>
    %c14 = arith.constant 14 : index
    %203 = memref.load %arg2[%c14] : memref<18xf32, #tpu.memory_space<smem>>
    %204 = vector.broadcast %203 : f32 to vector<1x256xf32>
    %205 = arith.mulf %204, %198 : vector<1x256xf32>
    %206 = arith.addf %202, %205 : vector<1x256xf32>
    %c241_i32 = arith.constant 241 : i32
    %207 = tpu.dynamic_rotate %5 by %c241_i32 dim 1 : vector<1x256xf32>, i32 -> vector<1x256xf32>
    %c241_i32_73 = arith.constant 241 : i32
    %208 = tpu.dynamic_rotate %7 by %c241_i32_73 dim 1 : vector<1x256xf32>, i32 -> vector<1x256xf32>
    %c1_i32_74 = arith.constant 1 : i32
    %209 = vector.broadcast %c1_i32_74 : i32 to vector<1x256xi32>
    %210 = arith.addi %8, %209 : vector<1x256xi32>
    %c0_i32_75 = arith.constant 0 : i32
    %211 = vector.broadcast %c0_i32_75 : i32 to vector<1x256xi32>
    %212 = arith.cmpi sge, %210, %211 : vector<1x256xi32>
    %c1_i32_76 = arith.constant 1 : i32
    %213 = vector.broadcast %c1_i32_76 : i32 to vector<1x256xi32>
    %214 = arith.addi %8, %213 : vector<1x256xi32>
    %c16_i32_77 = arith.constant 16 : i32
    %215 = vector.broadcast %c16_i32_77 : i32 to vector<1x256xi32>
    %216 = arith.cmpi slt, %214, %215 : vector<1x256xi32>
    %217 = arith.andi %212, %216 : vector<1x256xi1>
    %c-1_i32_78 = arith.constant -1 : i32
    %218 = vector.broadcast %c-1_i32_78 : i32 to vector<1x256xi32>
    %219 = arith.addi %9, %218 : vector<1x256xi32>
    %c0_i32_79 = arith.constant 0 : i32
    %220 = vector.broadcast %c0_i32_79 : i32 to vector<1x256xi32>
    %221 = arith.cmpi sge, %219, %220 : vector<1x256xi32>
    %222 = arith.andi %217, %221 : vector<1x256xi1>
    %c-1_i32_80 = arith.constant -1 : i32
    %223 = vector.broadcast %c-1_i32_80 : i32 to vector<1x256xi32>
    %224 = arith.addi %9, %223 : vector<1x256xi32>
    %c16_i32_81 = arith.constant 16 : i32
    %225 = vector.broadcast %c16_i32_81 : i32 to vector<1x256xi32>
    %226 = arith.cmpi slt, %224, %225 : vector<1x256xi32>
    %227 = arith.andi %222, %226 : vector<1x256xi1>
    %cst_82 = arith.constant 0.000000e+00 : f32
    %228 = vector.broadcast %cst_82 : f32 to vector<1x256xf32>
    %229 = arith.select %227, %207, %228 : vector<1x256xi1>, vector<1x256xf32>
    %cst_83 = arith.constant 0.000000e+00 : f32
    %230 = vector.broadcast %cst_83 : f32 to vector<1x256xf32>
    %231 = arith.select %227, %208, %230 : vector<1x256xi1>, vector<1x256xf32>
    %c6 = arith.constant 6 : index
    %232 = memref.load %arg2[%c6] : memref<18xf32, #tpu.memory_space<smem>>
    %233 = vector.broadcast %232 : f32 to vector<1x256xf32>
    %234 = arith.mulf %233, %229 : vector<1x256xf32>
    %235 = arith.addf %206, %234 : vector<1x256xf32>
    %c15 = arith.constant 15 : index
    %236 = memref.load %arg2[%c15] : memref<18xf32, #tpu.memory_space<smem>>
    %237 = vector.broadcast %236 : f32 to vector<1x256xf32>
    %238 = arith.mulf %237, %231 : vector<1x256xf32>
    %239 = arith.addf %235, %238 : vector<1x256xf32>
    %c240_i32 = arith.constant 240 : i32
    %240 = tpu.dynamic_rotate %5 by %c240_i32 dim 1 : vector<1x256xf32>, i32 -> vector<1x256xf32>
    %c240_i32_84 = arith.constant 240 : i32
    %241 = tpu.dynamic_rotate %7 by %c240_i32_84 dim 1 : vector<1x256xf32>, i32 -> vector<1x256xf32>
    %c1_i32_85 = arith.constant 1 : i32
    %242 = vector.broadcast %c1_i32_85 : i32 to vector<1x256xi32>
    %243 = arith.addi %8, %242 : vector<1x256xi32>
    %c0_i32_86 = arith.constant 0 : i32
    %244 = vector.broadcast %c0_i32_86 : i32 to vector<1x256xi32>
    %245 = arith.cmpi sge, %243, %244 : vector<1x256xi32>
    %c1_i32_87 = arith.constant 1 : i32
    %246 = vector.broadcast %c1_i32_87 : i32 to vector<1x256xi32>
    %247 = arith.addi %8, %246 : vector<1x256xi32>
    %c16_i32_88 = arith.constant 16 : i32
    %248 = vector.broadcast %c16_i32_88 : i32 to vector<1x256xi32>
    %249 = arith.cmpi slt, %247, %248 : vector<1x256xi32>
    %250 = arith.andi %245, %249 : vector<1x256xi1>
    %c0_i32_89 = arith.constant 0 : i32
    %251 = vector.broadcast %c0_i32_89 : i32 to vector<1x256xi32>
    %252 = arith.addi %9, %251 : vector<1x256xi32>
    %c0_i32_90 = arith.constant 0 : i32
    %253 = vector.broadcast %c0_i32_90 : i32 to vector<1x256xi32>
    %254 = arith.cmpi sge, %252, %253 : vector<1x256xi32>
    %255 = arith.andi %250, %254 : vector<1x256xi1>
    %c0_i32_91 = arith.constant 0 : i32
    %256 = vector.broadcast %c0_i32_91 : i32 to vector<1x256xi32>
    %257 = arith.addi %9, %256 : vector<1x256xi32>
    %c16_i32_92 = arith.constant 16 : i32
    %258 = vector.broadcast %c16_i32_92 : i32 to vector<1x256xi32>
    %259 = arith.cmpi slt, %257, %258 : vector<1x256xi32>
    %260 = arith.andi %255, %259 : vector<1x256xi1>
    %cst_93 = arith.constant 0.000000e+00 : f32
    %261 = vector.broadcast %cst_93 : f32 to vector<1x256xf32>
    %262 = arith.select %260, %240, %261 : vector<1x256xi1>, vector<1x256xf32>
    %cst_94 = arith.constant 0.000000e+00 : f32
    %263 = vector.broadcast %cst_94 : f32 to vector<1x256xf32>
    %264 = arith.select %260, %241, %263 : vector<1x256xi1>, vector<1x256xf32>
    %c7 = arith.constant 7 : index
    %265 = memref.load %arg2[%c7] : memref<18xf32, #tpu.memory_space<smem>>
    %266 = vector.broadcast %265 : f32 to vector<1x256xf32>
    %267 = arith.mulf %266, %262 : vector<1x256xf32>
    %268 = arith.addf %239, %267 : vector<1x256xf32>
    %c16 = arith.constant 16 : index
    %269 = memref.load %arg2[%c16] : memref<18xf32, #tpu.memory_space<smem>>
    %270 = vector.broadcast %269 : f32 to vector<1x256xf32>
    %271 = arith.mulf %270, %264 : vector<1x256xf32>
    %272 = arith.addf %268, %271 : vector<1x256xf32>
    %c239_i32 = arith.constant 239 : i32
    %273 = tpu.dynamic_rotate %5 by %c239_i32 dim 1 : vector<1x256xf32>, i32 -> vector<1x256xf32>
    %c239_i32_95 = arith.constant 239 : i32
    %274 = tpu.dynamic_rotate %7 by %c239_i32_95 dim 1 : vector<1x256xf32>, i32 -> vector<1x256xf32>
    %c1_i32_96 = arith.constant 1 : i32
    %275 = vector.broadcast %c1_i32_96 : i32 to vector<1x256xi32>
    %276 = arith.addi %8, %275 : vector<1x256xi32>
    %c0_i32_97 = arith.constant 0 : i32
    %277 = vector.broadcast %c0_i32_97 : i32 to vector<1x256xi32>
    %278 = arith.cmpi sge, %276, %277 : vector<1x256xi32>
    %c1_i32_98 = arith.constant 1 : i32
    %279 = vector.broadcast %c1_i32_98 : i32 to vector<1x256xi32>
    %280 = arith.addi %8, %279 : vector<1x256xi32>
    %c16_i32_99 = arith.constant 16 : i32
    %281 = vector.broadcast %c16_i32_99 : i32 to vector<1x256xi32>
    %282 = arith.cmpi slt, %280, %281 : vector<1x256xi32>
    %283 = arith.andi %278, %282 : vector<1x256xi1>
    %c1_i32_100 = arith.constant 1 : i32
    %284 = vector.broadcast %c1_i32_100 : i32 to vector<1x256xi32>
    %285 = arith.addi %9, %284 : vector<1x256xi32>
    %c0_i32_101 = arith.constant 0 : i32
    %286 = vector.broadcast %c0_i32_101 : i32 to vector<1x256xi32>
    %287 = arith.cmpi sge, %285, %286 : vector<1x256xi32>
    %288 = arith.andi %283, %287 : vector<1x256xi1>
    %c1_i32_102 = arith.constant 1 : i32
    %289 = vector.broadcast %c1_i32_102 : i32 to vector<1x256xi32>
    %290 = arith.addi %9, %289 : vector<1x256xi32>
    %c16_i32_103 = arith.constant 16 : i32
    %291 = vector.broadcast %c16_i32_103 : i32 to vector<1x256xi32>
    %292 = arith.cmpi slt, %290, %291 : vector<1x256xi32>
    %293 = arith.andi %288, %292 : vector<1x256xi1>
    %cst_104 = arith.constant 0.000000e+00 : f32
    %294 = vector.broadcast %cst_104 : f32 to vector<1x256xf32>
    %295 = arith.select %293, %273, %294 : vector<1x256xi1>, vector<1x256xf32>
    %cst_105 = arith.constant 0.000000e+00 : f32
    %296 = vector.broadcast %cst_105 : f32 to vector<1x256xf32>
    %297 = arith.select %293, %274, %296 : vector<1x256xi1>, vector<1x256xf32>
    %c8 = arith.constant 8 : index
    %298 = memref.load %arg2[%c8] : memref<18xf32, #tpu.memory_space<smem>>
    %299 = vector.broadcast %298 : f32 to vector<1x256xf32>
    %300 = arith.mulf %299, %295 : vector<1x256xf32>
    %301 = arith.addf %272, %300 : vector<1x256xf32>
    %c17 = arith.constant 17 : index
    %302 = memref.load %arg2[%c17] : memref<18xf32, #tpu.memory_space<smem>>
    %303 = vector.broadcast %302 : f32 to vector<1x256xf32>
    %304 = arith.mulf %303, %297 : vector<1x256xf32>
    %305 = arith.addf %301, %304 : vector<1x256xf32>
    %306 = arith.negf %305 : vector<1x256xf32>
    %307 = math.exp %306 : vector<1x256xf32>
    %cst_106 = arith.constant 1.000000e+00 : f32
    %308 = vector.broadcast %cst_106 : f32 to vector<1x256xf32>
    %309 = arith.addf %308, %307 : vector<1x256xf32>
    %310 = arith.divf %308, %309 : vector<1x256xf32>
    %c0_107 = arith.constant 0 : index
    %c0_108 = arith.constant 0 : index
    %c0_109 = arith.constant 0 : index
    %311 = vector.load %arg5[%c0_107, %c0_108, %c0_109] : memref<1x1x256xf32, #tpu.memory_space<vmem>>, vector<1x1x256xf32>
    %312 = vector.shape_cast %311 : vector<1x1x256xf32> to vector<1x256xf32>
    %313 = vector.shape_cast %310 : vector<1x256xf32> to vector<1x1x256xf32>
    tpu.vector_store %arg5[%c0_107, %c0_108, %c0_109], %313 {strides = array<i32>} : memref<1x1x256xf32, #tpu.memory_space<vmem>>, vector<1x1x256xf32>,
    return
  }
  func.func @transform_0(%arg0: i32) -> (i32, i32, i32) {
    %c0_i32 = arith.constant 0 : i32
    %c0_i32_0 = arith.constant 0 : i32
    %c0_i32_1 = arith.constant 0 : i32
    return %arg0, %c0_i32, %c0_i32_0 : i32, i32, i32
  }
  func.func @transform_1(%arg0: i32) -> i32 {
    %c0_i32 = arith.constant 0 : i32
    %c0_i32_0 = arith.constant 0 : i32
    return %c0_i32 : i32
  }
  func.func @transform_2(%arg0: i32) -> (i32, i32) {
    %c0_i32 = arith.constant 0 : i32
    %c0_i32_0 = arith.constant 0 : i32
    %c0_i32_1 = arith.constant 0 : i32
    return %c0_i32, %c0_i32_0 : i32, i32
  }
  func.func @transform_3(%arg0: i32) -> (i32, i32) {
    %c0_i32 = arith.constant 0 : i32
    %c0_i32_0 = arith.constant 0 : i32
    %c0_i32_1 = arith.constant 0 : i32
    return %c0_i32, %c0_i32_0 : i32, i32
  }
  func.func @transform_4(%arg0: i32) -> (i32, i32, i32) {
    %c0_i32 = arith.constant 0 : i32
    %c0_i32_0 = arith.constant 0 : i32
    %c0_i32_1 = arith.constant 0 : i32
    return %arg0, %c0_i32, %c0_i32_0 : i32, i32, i32
  }
}

</mosaic_0001>

<llo_original>
// kernel: tpu_custom_call.1
$region0: #{tpu_custom_call.1}
  #allocation0 [shape = 'u32[]', space=smem, size = 0x4, offset = 0x4, fixed_abs, tag = 'smem constant byte address 0x4 - core index']
  #allocation1 [shape = 'u32[144,128]{1,0:T(1,128)}', space=vmem, size = 0x12000, scoped, tag = 'internal scratch']
  %s0 = inlined_call_operand.hbm [shape: f32[2,4,256], index: 0, kind: input, shape index: {}]
  %s1 = inlined_call_operand.vmem [shape: f32[18], index: 1, kind: input, shape index: {}]
  %s2 = inlined_call_operand.vmem [shape: s32[1,256], index: 2, kind: input, shape index: {}]
  %s3 = inlined_call_operand.vmem [shape: s32[1,256], index: 3, kind: input, shape index: {}]
  %s4 = inlined_call_operand.hbm [shape: f32[2,1,256], index: 4, kind: output, shape index: {}]
  %s5 = sld [smem:[#allocation0]]
  $region57: #{tpu_custom_call.1} parent=0
    _
  %s7 = ssub.s32 1, %s5
  %s8 = scalar_select 0, %s7, %s5
  $region1: #{tpu_custom_call.1} parent=0
    #allocation2 [shape = 'u8[8192]{0}', space=vmem, size = 0x2000, scoped, tag = 'input window, operand 0']
    #allocation3 [shape = 's32[2]{0}', space=sflag, size = 0x8, scoped, tag = 'scoped memory for tpu_custom_call.1']
    #allocation4 [shape = 's32[2]{0}', space=sflag, size = 0x8, scoped, tag = 'scoped memory for tpu_custom_call.1']
    #allocation5 [shape = 's32[2]{0}', space=sflag, size = 0x8, scoped, tag = 'scoped memory for tpu_custom_call.1']
    #allocation6 [shape = 'u8[512]{0}', space=smem, size = 0x200, scoped, tag = 'input window, operand 1, single buffered']
    #allocation7 [shape = 'u8[2048]{0}', space=vmem, size = 0x800, scoped, tag = 'output window, operand 0']
    %9 = vsyncpa [#allocation3], 0
    %s10 = scalar_lea.sflag [#allocation3], 1
    %11 = vsyncpa %s10, 0
    %12 = vsyncpa [#allocation5], 0
    %13 = vsyncpa [#allocation4], 0
    %s14 = scalar_lea.sflag [#allocation4], 1
    %15 = vsyncpa %s14, 0
    loop: start=0, step=1, limit=4
    $region2: #{tpu_custom_call.1} parent=1 // loop_pre_header
      _
    $region3: #{tpu_custom_call.1} parent=1 // loop_header
      %s17 = sphi 0, %s21
      %p18 = scmp.ge.s32.totalorder %s17, 4
      %s27 = sphi 0, %s29
      %s30 = sphi 0, %s27
      %s31 = sphi 0, %s30
      %s47 = sphi 0, %s31
      %s51 = sphi 0, %s51
      %s53 = sphi 0, %s51
      %s54 = sphi 0, %s53
      %s68 = sphi 0, %s54
      %s72 = sphi 0, %s72
      %s74 = sphi 0, %s72
      %s75 = sphi 0, %s74
      %s89 = sphi 0, %s75
      %s93 = sphi 0, %s93
      %s95 = sphi 0, %s93
      %s96 = sphi 0, %s95
      %s110 = sphi 0, %s96
      %s116 = sphi 0, %s118
      %s119 = sphi 0, %s116
      %s120 = sphi 0, %s119
      %s136 = sphi 0, %s120
    $region4: #{tpu_custom_call.1} parent=1 // loop_header_branch
      %20 = sbr.rel (%p18) target = $region8
    $region5: #{tpu_custom_call.1} parent=1 // loop_body
      %s22 = ssub.s32 %s17, 1
      %s23 = ssub.s32 %s17, 2
      %s24 = sadd.s32 %s17, 1
      %s25 = ssub.s32 %s17, %s24
      %p26 = scmp.eq.s32.totalorder %s25, 0
      %s28 = sadd.s32 %s27, 1
      %s29 = scalar_select %p26, %s27, %s28
      %p32 = pneg %p26
      %p33 = scmp.eq.s32.totalorder %s17, 1
      %p34 = por %p32, %p33
      %p35 = scmp.ne.s32.totalorder %s27, %s30
      %p36 = scmp.eq.s32.totalorder %s17, 0
      %p37 = por %p35, %p36
      %p38 = scmp.ne.s32.totalorder %s27, %s30
      %p39 = scmp.eq.s32.totalorder %s22, 1
      %p40 = por %p38, %p39
      %p41 = scmp.ne.s32.totalorder %s30, %s31
      %p42 = scmp.eq.s32.totalorder %s22, 0
      %p43 = por %p41, %p42
      %p44 = scmp.ne.s32.totalorder %s30, %s31
      %p45 = scmp.eq.s32.totalorder %s23, 1
      %p46 = por %p44, %p45
      %p48 = scmp.ne.s32.totalorder %s31, %s47
      %p49 = scmp.eq.s32.totalorder %s23, 0
      %p50 = por %p48, %p49
      %s52 = sadd.s32 %s51, 1
      %p55 = scmp.eq.s32.totalorder %s17, 1
      %p56 = scmp.ne.s32.totalorder %s51, %s53
      %p57 = scmp.eq.s32.totalorder %s17, 0
      %p58 = por %p56, %p57
      %p59 = scmp.ne.s32.totalorder %s51, %s53
      %p60 = scmp.eq.s32.totalorder %s22, 1
      %p61 = por %p59, %p60
      %p62 = scmp.ne.s32.totalorder %s53, %s54
      %p63 = scmp.eq.s32.totalorder %s22, 0
      %p64 = por %p62, %p63
      %p65 = scmp.ne.s32.totalorder %s53, %s54
      %p66 = scmp.eq.s32.totalorder %s23, 1
      %p67 = por %p65, %p66
      %p69 = scmp.ne.s32.totalorder %s54, %s68
      %p70 = scmp.eq.s32.totalorder %s23, 0
      %p71 = por %p69, %p70
      %s73 = sadd.s32 %s72, 1
      %p76 = scmp.eq.s32.totalorder %s17, 1
      %p77 = scmp.ne.s32.totalorder %s72, %s74
      %p78 = scmp.eq.s32.totalorder %s17, 0
      %p79 = por %p77, %p78
      %p80 = scmp.ne.s32.totalorder %s72, %s74
      %p81 = scmp.eq.s32.totalorder %s22, 1
      %p82 = por %p80, %p81
      %p83 = scmp.ne.s32.totalorder %s74, %s75
      %p84 = scmp.eq.s32.totalorder %s22, 0
      %p85 = por %p83, %p84
      %p86 = scmp.ne.s32.totalorder %s74, %s75
      %p87 = scmp.eq.s32.totalorder %s23, 1
      %p88 = por %p86, %p87
      %p90 = scmp.ne.s32.totalorder %s75, %s89
      %p91 = scmp.eq.s32.totalorder %s23, 0
      %p92 = por %p90, %p91
      %s94 = sadd.s32 %s93, 1
      %p97 = scmp.eq.s32.totalorder %s17, 1
      %p98 = scmp.ne.s32.totalorder %s93, %s95
      %p99 = scmp.eq.s32.totalorder %s17, 0
      %p100 = por %p98, %p99
      %p101 = scmp.ne.s32.totalorder %s93, %s95
      %p102 = scmp.eq.s32.totalorder %s22, 1
      %p103 = por %p101, %p102
      %p104 = scmp.ne.s32.totalorder %s95, %s96
      %p105 = scmp.eq.s32.totalorder %s22, 0
      %p106 = por %p104, %p105
      %p107 = scmp.ne.s32.totalorder %s95, %s96
      %p108 = scmp.eq.s32.totalorder %s23, 1
      %p109 = por %p107, %p108
      %p111 = scmp.ne.s32.totalorder %s96, %s110
      %p112 = scmp.eq.s32.totalorder %s23, 0
      %p113 = por %p111, %p112
      %s114 = ssub.s32 %s17, %s24
      %p115 = scmp.eq.s32.totalorder %s114, 0
      %s117 = sadd.s32 %s116, 1
      %s118 = scalar_select %p115, %s116, %s117
      %p121 = pneg %p115
      %p122 = scmp.eq.s32.totalorder %s17, 1
      %p123 = por %p121, %p122
      %p124 = scmp.ne.s32.totalorder %s116, %s119
      %p125 = scmp.eq.s32.totalorder %s17, 0
      %p126 = por %p124, %p125
      %p127 = scmp.ne.s32.totalorder %s116, %s119
      %p128 = scmp.eq.s32.totalorder %s22, 1
      %p129 = por %p127, %p128
      %p130 = scmp.ne.s32.totalorder %s119, %s120
      %p131 = scmp.eq.s32.totalorder %s22, 0
      %p132 = por %p130, %p131
      %p133 = scmp.ne.s32.totalorder %s119, %s120
      %p134 = scmp.eq.s32.totalorder %s23, 1
      %p135 = por %p133, %p134
      %p137 = scmp.ne.s32.totalorder %s120, %s136
      %p138 = scmp.eq.s32.totalorder %s23, 0
      %p139 = por %p137, %p138
      %p140 = scmp.le.s32.totalorder 1, %s17
      %p141 = scmp.lt.s32.totalorder %s17, 3
      %p142 = pnand %p140, %p141
      %p143 = pneg %p142
      // Predicated region
      $region9: #{tpu_custom_call.1} parent=5 // pred_check
        _
      $region10: #{tpu_custom_call.1} parent=5 // pred_check_branch
        %145 = sbr.rel (%p142) target = $region12
      $region11: #{tpu_custom_call.1} parent=5 // pred_region
        %s146 = ssub.s32 %s17, 1
        // Predicated region
        $region13: #{tpu_custom_call.1} parent=11 // pred_check
          %p147 = pneg %p64
        $region14: #{tpu_custom_call.1} parent=11 // pred_check_branch
          %149 = sbr.rel (%p147) target = $region16
        $region15: #{tpu_custom_call.1} parent=11 // pred_region
          %s151 = ssub.s32 16, 16
          %152 = vsyncadd [#allocation5], %s151
          %s154 = sshll.u32 %s1, 4
          %s155 = int_to_ptr.vmem [resolvable:$true] %s154
          %157 = dma.vmem_to_smem %s155, 16, [#allocation6], [#allocation5]
        $region16: #{tpu_custom_call.1} parent=11 // pred_fallthru
          _
        // Predicated region
        $region17: #{tpu_custom_call.1} parent=11 // pred_check
          %p158 = pneg %p85
        $region18: #{tpu_custom_call.1} parent=11 // pred_check_branch
          %160 = sbr.rel (%p158) target = $region20
        $region19: #{tpu_custom_call.1} parent=11 // pred_region
          _
        $region20: #{tpu_custom_call.1} parent=11 // pred_fallthru
          _
        // Predicated region
        $region21: #{tpu_custom_call.1} parent=11 // pred_check
          %p161 = pneg %p106
        $region22: #{tpu_custom_call.1} parent=11 // pred_check_branch
          %163 = sbr.rel (%p161) target = $region24
        $region23: #{tpu_custom_call.1} parent=11 // pred_region
          _
        $region24: #{tpu_custom_call.1} parent=11 // pred_fallthru
          _
      $region12: #{tpu_custom_call.1} parent=5 // pred_fallthru
        _
      %p164 = scmp.lt.s32.totalorder %s17, 2
      // Predicated region
      $region25: #{tpu_custom_call.1} parent=5 // pred_check
        %p165 = pneg %p164
      $region26: #{tpu_custom_call.1} parent=5 // pred_check_branch
        %167 = sbr.rel (%p165) target = $region28
      $region27: #{tpu_custom_call.1} parent=5 // pred_region
        // Predicated region
        $region29: #{tpu_custom_call.1} parent=27 // pred_check
          %p168 = pneg %p37
        $region30: #{tpu_custom_call.1} parent=27 // pred_check_branch
          %170 = sbr.rel (%p168) target = $region32
        $region31: #{tpu_custom_call.1} parent=27 // pred_region
          %s171 = sand.u32 %s27, 1
          %s172 = scalar_lea.sflag [#allocation3], %s171
          %s173 = sand.u32 %s27, 1
          %s174 = smul.addr %s173, 8
          %s175 = scalar_lea.vmem [#allocation2], %s174
          %s177 = ssub.s32 128, 128
          %178 = vsyncadd %s172, %s177
          %s179 = smul.addr %s17, 2
          %s180 = smul.addr %s179, 64
          %s181 = scalar_lea.hbm %s0, %s180
          %s183 = sshll.u32 %s175, 4
          %s184 = int_to_ptr.vmem [resolvable:$true] %s183
          %186 = dma.hbm_to_vmem [thread:$0]  %s181, 128, %s184, %s172
        $region32: #{tpu_custom_call.1} parent=27 // pred_fallthru
          _
      $region28: #{tpu_custom_call.1} parent=5 // pred_fallthru
        _
      %p187 = scmp.le.s32.totalorder 1, %s17
      %p188 = scmp.lt.s32.totalorder %s17, 3
      %p189 = pnand %p187, %p188
      %p190 = pneg %p189
      // Predicated region
      $region33: #{tpu_custom_call.1} parent=5 // pred_check
        _
      $region34: #{tpu_custom_call.1} parent=5 // pred_check_branch
        %192 = sbr.rel (%p189) target = $region36
      $region35: #{tpu_custom_call.1} parent=5 // pred_region
        %s193 = ssub.s32 %s17, 1
        %s194 = sand.u32 %s30, 1
        %s195 = scalar_lea.sflag [#allocation3], %s194
        %s196 = sand.u32 %s30, 1
        %s197 = smul.addr %s196, 8
        %s198 = scalar_lea.vmem [#allocation2], %s197
        // Predicated region
        $region37: #{tpu_custom_call.1} parent=35 // pred_check
          %p199 = pneg %p43
        $region38: #{tpu_custom_call.1} parent=35 // pred_check_branch
          %201 = sbr.rel (%p199) target = $region40
        $region39: #{tpu_custom_call.1} parent=35 // pred_region
          %202 = dma.done %s195, 128
        $region40: #{tpu_custom_call.1} parent=35 // pred_fallthru
          _
        // Predicated region
        $region41: #{tpu_custom_call.1} parent=35 // pred_check
          %p203 = pneg %p64
        $region42: #{tpu_custom_call.1} parent=35 // pred_check_branch
          %205 = sbr.rel (%p203) target = $region44
        $region43: #{tpu_custom_call.1} parent=35 // pred_region
          %206 = dma.done [#allocation5], 16
        $region44: #{tpu_custom_call.1} parent=35 // pred_fallthru
          _
        %207 = sfence
        %s208 = sand.u32 %s30, 1
        %s209 = scalar_lea.sflag [#allocation3], %s208
        %s210 = sand.u32 %s30, 1
        %s211 = smul.addr %s210, 8
        %s212 = scalar_lea.vmem [#allocation2], %s211
        %p213 = pneg %p43
        %p214 = pneg %p40
        %p215 = pneg %p64
        %p216 = pneg %p61
        %p217 = pneg %p85
        %p218 = pneg %p82
        %p219 = pneg %p106
        %p220 = pneg %p103
        %p221 = pneg %p132
        %p222 = pneg %p129
        %s223 = sand.u32 %s119, 1
        %s224 = scalar_lea.sflag [#allocation4], %s223
        %s225 = sand.u32 %s119, 1
        %s226 = smul.addr %s225, 2
        %s227 = scalar_lea.vmem [#allocation7], %s226
        %v228 = vld [vmem:[%s198] sm:$0xff]
        %v230 = vcombine.high %v228, %v228
        %vm232 = vcmask 1043456
        %v233 = vsel %vm232, %v228, 0.0
        %v234 = vrot.slane %v233, 4
        %v235 = vadd.f32 %v233, %v234
        %v236 = vrot.slane %v235, 2
        %v237 = vadd.f32 %v235, %v236
        %v238 = vrot.slane %v237, 1
        %v239 = vadd.f32 %v237, %v238
        %v240 = vsel %vm232, %v230, 0.0
        %v241 = vrot.slane %v240, 4
        %v242 = vadd.f32 %v240, %v241
        %v243 = vrot.slane %v242, 2
        %v244 = vadd.f32 %v242, %v243
        %v245 = vrot.slane %v244, 1
        %v246 = vadd.f32 %v244, %v245
        %v247 = vmul.f32 %v239, 0.25
        %v248 = vmul.f32 %v246, 0.25
        %v249 = vsel %vm232, %v228, -inf
        %v250 = vrot.slane %v249, 4
        %v251 = vmax.f32 %v249, %v250
        %v252 = vrot.slane %v251, 2
        %v253 = vmax.f32 %v251, %v252
        %v254 = vrot.slane %v253, 1
        %v255 = vmax.f32 %v253, %v254
        %v256 = vsel %vm232, %v230, -inf
        %v257 = vrot.slane %v256, 4
        %v258 = vmax.f32 %v256, %v257
        %v259 = vrot.slane %v258, 2
        %v260 = vmax.f32 %v258, %v259
        %v261 = vrot.slane %v260, 1
        %v262 = vmax.f32 %v260, %v261
        %v263 = vld [vmem:[%s2] sm:$0x3]
        %v264 = vld [vmem:[%s3] sm:$0x3]
        %265 = vrot.lane.b32.xlu0 %v247, 17
        %v266 = vpop.permute.xlu0 %265
        %267 = vrot.lane.b32.xlu0 %v248, 17
        %v268 = vpop.permute.xlu0 %267
        %v269 = vlaneseq
        %v270 = vand.u32 %v269, 127
        %vm271 = vcmp.lt.s32.totalorder %v270, 17
        %v272 = vsel %vm271, %v266, %v268
        %v273 = vsel %vm271, %v268, %v266
        %274 = vrot.lane.b32.xlu0 %v255, 17
        %v275 = vpop.permute.xlu0 %274
        %276 = vrot.lane.b32.xlu0 %v262, 17
        %v277 = vpop.permute.xlu0 %276
        %v278 = vsel %vm271, %v275, %v277
        %v279 = vsel %vm271, %v277, %v275
        %v280 = vadd.s32 %v263, 4294967295
        %vm281 = vcmp.ge.s32.totalorder %v280, 0
        %vm282 = vcmp.lt.s32.totalorder %v280, 16
        %vm283 = vmand %vm281, %vm282
        %v284 = vadd.s32 %v264, 4294967295
        %vm285 = vcmp.ge.s32.totalorder %v284, 0
        %vm286 = vmand %vm283, %vm285
        %vm287 = vcmp.lt.s32.totalorder %v284, 16
        %vm288 = vmand %vm286, %vm287
        %v291 = vcombine.low %v273, %v272
        %v293 = vunpack.c.l.s4 1966171168
        %v294 = vunpack.c.0.s8 %v293
        %v295 = vlaneseq
        %v296 = vshrl.u32 %v295, 7
        %v297 = vsub.s32 %v294, %v296
        %v298 = vrot.slane %v291, %v297
        %v300 = vunpack.c.l.s4 1966171168
        %v301 = vunpack.c.0.s8 %v300
        %v302 = vlaneseq
        %v303 = vshrl.u32 %v302, 7
        %v304 = vsub.s32 %v301, %v303
        %v305 = vrot.slane %v298, %v304
        %v307 = vsel %vm288, %v305, 0.0
        %v310 = vcombine.low %v279, %v278
        %v312 = vunpack.c.l.s4 1966171168
        %v313 = vunpack.c.0.s8 %v312
        %v314 = vlaneseq
        %v315 = vshrl.u32 %v314, 7
        %v316 = vsub.s32 %v313, %v315
        %v317 = vrot.slane %v310, %v316
        %v319 = vunpack.c.l.s4 1966171168
        %v320 = vunpack.c.0.s8 %v319
        %v321 = vlaneseq
        %v322 = vshrl.u32 %v321, 7
        %v323 = vsub.s32 %v320, %v322
        %v324 = vrot.slane %v317, %v323
        %v326 = vsel %vm288, %v324, 0.0
        %s327 = sld [smem:[#allocation6]]
        %v328 = vstv %s327
        %v329 = vmul.f32 %v328, %v307
        %v330 = vadd.f32 %v329, 0.0
        %s331 = sld [smem:[#allocation6 + $0x9]]
        %v332 = vstv %s331
        %v333 = vmul.f32 %v332, %v326
        %v334 = vadd.f32 %v330, %v333
        %335 = vrot.lane.b32.xlu0 %v247, 16
        %v336 = vpop.permute.xlu0 %335
        %337 = vrot.lane.b32.xlu0 %v248, 16
        %v338 = vpop.permute.xlu0 %337
        %vm339 = vcmp.lt.s32.totalorder %v270, 16
        %v340 = vsel %vm339, %v336, %v338
        %v341 = vsel %vm339, %v338, %v336
        %342 = vrot.lane.b32.xlu0 %v255, 16
        %v343 = vpop.permute.xlu0 %342
        %344 = vrot.lane.b32.xlu0 %v262, 16
        %v345 = vpop.permute.xlu0 %344
        %v346 = vsel %vm339, %v343, %v345
        %v347 = vsel %vm339, %v345, %v343
        %vm348 = vcmp.ge.s32.totalorder %v264, 0
        %vm349 = vmand %vm283, %vm348
        %vm350 = vcmp.lt.s32.totalorder %v264, 16
        %vm351 = vmand %vm349, %vm350
        %v354 = vcombine.low %v341, %v340
        %v356 = vunpack.c.l.s4 1966171168
        %v357 = vunpack.c.0.s8 %v356
        %v358 = vlaneseq
        %v359 = vshrl.u32 %v358, 7
        %v360 = vsub.s32 %v357, %v359
        %v361 = vrot.slane %v354, %v360
        %v363 = vunpack.c.l.s4 1966171168
        %v364 = vunpack.c.0.s8 %v363
        %v365 = vlaneseq
        %v366 = vshrl.u32 %v365, 7
        %v367 = vsub.s32 %v364, %v366
        %v368 = vrot.slane %v361, %v367
        %v370 = vsel %vm351, %v368, 0.0
        %v373 = vcombine.low %v347, %v346
        %v375 = vunpack.c.l.s4 1966171168
        %v376 = vunpack.c.0.s8 %v375
        %v377 = vlaneseq
        %v378 = vshrl.u32 %v377, 7
        %v379 = vsub.s32 %v376, %v378
        %v380 = vrot.slane %v373, %v379
        %v382 = vunpack.c.l.s4 1966171168
        %v383 = vunpack.c.0.s8 %v382
        %v384 = vlaneseq
        %v385 = vshrl.u32 %v384, 7
        %v386 = vsub.s32 %v383, %v385
        %v387 = vrot.slane %v380, %v386
        %v389 = vsel %vm351, %v387, 0.0
        %s390 = sld [smem:[#allocation6 + $0x1]]
        %v391 = vstv %s390
        %v392 = vmul.f32 %v391, %v370
        %v393 = vadd.f32 %v334, %v392
        %s394 = sld [smem:[#allocation6 + $0xa]]
        %v395 = vstv %s394
        %v396 = vmul.f32 %v395, %v389
        %v397 = vadd.f32 %v393, %v396
        %398 = vrot.lane.b32.xlu0 %v247, 15
        %v399 = vpop.permute.xlu0 %398
        %400 = vrot.lane.b32.xlu0 %v248, 15
        %v401 = vpop.permute.xlu0 %400
        %vm402 = vcmp.lt.s32.totalorder %v270, 15
        %v403 = vsel %vm402, %v399, %v401
        %v404 = vsel %vm402, %v401, %v399
        %405 = vrot.lane.b32.xlu0 %v255, 15
        %v406 = vpop.permute.xlu0 %405
        %407 = vrot.lane.b32.xlu0 %v262, 15
        %v408 = vpop.permute.xlu0 %407
        %v409 = vsel %vm402, %v406, %v408
        %v410 = vsel %vm402, %v408, %v406
        %v411 = vadd.s32 %v264, 1
        %vm412 = vcmp.ge.s32.totalorder %v411, 0
        %vm413 = vmand %vm283, %vm412
        %vm414 = vcmp.lt.s32.totalorder %v411, 16
        %vm415 = vmand %vm413, %vm414
        %v418 = vcombine.low %v404, %v403
        %v420 = vunpack.c.l.s4 1966171168
        %v421 = vunpack.c.0.s8 %v420
        %v422 = vlaneseq
        %v423 = vshrl.u32 %v422, 7
        %v424 = vsub.s32 %v421, %v423
        %v425 = vrot.slane %v418, %v424
        %v427 = vunpack.c.l.s4 1966171168
        %v428 = vunpack.c.0.s8 %v427
        %v429 = vlaneseq
        %v430 = vshrl.u32 %v429, 7
        %v431 = vsub.s32 %v428, %v430
        %v432 = vrot.slane %v425, %v431
        %v434 = vsel %vm415, %v432, 0.0
        %v437 = vcombine.low %v410, %v409
        %v439 = vunpack.c.l.s4 1966171168
        %v440 = vunpack.c.0.s8 %v439
        %v441 = vlaneseq
        %v442 = vshrl.u32 %v441, 7
        %v443 = vsub.s32 %v440, %v442
        %v444 = vrot.slane %v437, %v443
        %v446 = vunpack.c.l.s4 1966171168
        %v447 = vunpack.c.0.s8 %v446
        %v448 = vlaneseq
        %v449 = vshrl.u32 %v448, 7
        %v450 = vsub.s32 %v447, %v449
        %v451 = vrot.slane %v444, %v450
        %v453 = vsel %vm415, %v451, 0.0
        %s454 = sld [smem:[#allocation6 + $0x2]]
        %v455 = vstv %s454
        %v456 = vmul.f32 %v455, %v434
        %v457 = vadd.f32 %v397, %v456
        %s458 = sld [smem:[#allocation6 + $0xb]]
        %v459 = vstv %s458
        %v460 = vmul.f32 %v459, %v453
        %v461 = vadd.f32 %v457, %v460
        %462 = vrot.lane.b32.xlu0 %v247, 1
        %v463 = vpop.permute.xlu0 %462
        %464 = vrot.lane.b32.xlu0 %v248, 1
        %v465 = vpop.permute.xlu0 %464
        %vm466 = vcmp.lt.s32.totalorder %v270, 1
        %v467 = vsel %vm466, %v463, %v465
        %v468 = vsel %vm466, %v465, %v463
        %469 = vrot.lane.b32.xlu0 %v255, 1
        %v470 = vpop.permute.xlu0 %469
        %471 = vrot.lane.b32.xlu0 %v262, 1
        %v472 = vpop.permute.xlu0 %471
        %v473 = vsel %vm466, %v470, %v472
        %v474 = vsel %vm466, %v472, %v470
        %vm475 = vcmp.ge.s32.totalorder %v263, 0
        %vm476 = vcmp.lt.s32.totalorder %v263, 16
        %vm477 = vmand %vm475, %vm476
        %vm478 = vmand %vm477, %vm285
        %vm479 = vmand %vm478, %vm287
        %v482 = vcombine.low %v468, %v467
        %v484 = vunpack.c.l.s4 1966171168
        %v485 = vunpack.c.0.s8 %v484
        %v486 = vlaneseq
        %v487 = vshrl.u32 %v486, 7
        %v488 = vsub.s32 %v485, %v487
        %v489 = vrot.slane %v482, %v488
        %v491 = vunpack.c.l.s4 1966171168
        %v492 = vunpack.c.0.s8 %v491
        %v493 = vlaneseq
        %v494 = vshrl.u32 %v493, 7
        %v495 = vsub.s32 %v492, %v494
        %v496 = vrot.slane %v489, %v495
        %v498 = vsel %vm479, %v496, 0.0
        %v501 = vcombine.low %v474, %v473
        %v503 = vunpack.c.l.s4 1966171168
        %v504 = vunpack.c.0.s8 %v503
        %v505 = vlaneseq
        %v506 = vshrl.u32 %v505, 7
        %v507 = vsub.s32 %v504, %v506
        %v508 = vrot.slane %v501, %v507
        %v510 = vunpack.c.l.s4 1966171168
        %v511 = vunpack.c.0.s8 %v510
        %v512 = vlaneseq
        %v513 = vshrl.u32 %v512, 7
        %v514 = vsub.s32 %v511, %v513
        %v515 = vrot.slane %v508, %v514
        %v517 = vsel %vm479, %v515, 0.0
        %s518 = sld [smem:[#allocation6 + $0x3]]
        %v519 = vstv %s518
        %v520 = vmul.f32 %v519, %v498
        %v521 = vadd.f32 %v461, %v520
        %s522 = sld [smem:[#allocation6 + $0xc]]
        %v523 = vstv %s522
        %v524 = vmul.f32 %v523, %v517
        %v525 = vadd.f32 %v521, %v524
        %vm526 = vmand %vm477, %vm348
        %vm527 = vmand %vm526, %vm350
        %v530 = vcombine.low %v247, %v248
        %v532 = vunpack.c.l.s4 1966171168
        %v533 = vunpack.c.0.s8 %v532
        %v534 = vlaneseq
        %v535 = vshrl.u32 %v534, 7
        %v536 = vsub.s32 %v533, %v535
        %v537 = vrot.slane %v530, %v536
        %v539 = vunpack.c.l.s4 1966171168
        %v540 = vunpack.c.0.s8 %v539
        %v541 = vlaneseq
        %v542 = vshrl.u32 %v541, 7
        %v543 = vsub.s32 %v540, %v542
        %v544 = vrot.slane %v537, %v543
        %v546 = vsel %vm527, %v544, 0.0
        %v549 = vcombine.low %v255, %v262
        %v551 = vunpack.c.l.s4 1966171168
        %v552 = vunpack.c.0.s8 %v551
        %v553 = vlaneseq
        %v554 = vshrl.u32 %v553, 7
        %v555 = vsub.s32 %v552, %v554
        %v556 = vrot.slane %v549, %v555
        %v558 = vunpack.c.l.s4 1966171168
        %v559 = vunpack.c.0.s8 %v558
        %v560 = vlaneseq
        %v561 = vshrl.u32 %v560, 7
        %v562 = vsub.s32 %v559, %v561
        %v563 = vrot.slane %v556, %v562
        %v565 = vsel %vm527, %v563, 0.0
        %s566 = sld [smem:[#allocation6 + $0x4]]
        %v567 = vstv %s566
        %v568 = vmul.f32 %v567, %v546
        %v569 = vadd.f32 %v525, %v568
        %s570 = sld [smem:[#allocation6 + $0xd]]
        %v571 = vstv %s570
        %v572 = vmul.f32 %v571, %v565
        %v573 = vadd.f32 %v569, %v572
        %574 = vrot.lane.b32.xlu0 %v247, 127
        %v575 = vpop.permute.xlu0 %574
        %576 = vrot.lane.b32.xlu0 %v248, 127
        %v577 = vpop.permute.xlu0 %576
        %vm578 = vcmp.lt.s32.totalorder %v270, 127
        %v579 = vsel %vm578, %v575, %v577
        %v580 = vsel %vm578, %v577, %v575
        %581 = vrot.lane.b32.xlu0 %v255, 127
        %v582 = vpop.permute.xlu0 %581
        %583 = vrot.lane.b32.xlu0 %v262, 127
        %v584 = vpop.permute.xlu0 %583
        %v585 = vsel %vm578, %v582, %v584
        %v586 = vsel %vm578, %v584, %v582
        %vm587 = vmand %vm477, %vm412
        %vm588 = vmand %vm587, %vm414
        %v591 = vcombine.low %v579, %v580
        %v593 = vunpack.c.l.s4 1966171168
        %v594 = vunpack.c.0.s8 %v593
        %v595 = vlaneseq
        %v596 = vshrl.u32 %v595, 7
        %v597 = vsub.s32 %v594, %v596
        %v598 = vrot.slane %v591, %v597
        %v600 = vunpack.c.l.s4 1966171168
        %v601 = vunpack.c.0.s8 %v600
        %v602 = vlaneseq
        %v603 = vshrl.u32 %v602, 7
        %v604 = vsub.s32 %v601, %v603
        %v605 = vrot.slane %v598, %v604
        %v607 = vsel %vm588, %v605, 0.0
        %v610 = vcombine.low %v585, %v586
        %v612 = vunpack.c.l.s4 1966171168
        %v613 = vunpack.c.0.s8 %v612
        %v614 = vlaneseq
        %v615 = vshrl.u32 %v614, 7
        %v616 = vsub.s32 %v613, %v615
        %v617 = vrot.slane %v610, %v616
        %v619 = vunpack.c.l.s4 1966171168
        %v620 = vunpack.c.0.s8 %v619
        %v621 = vlaneseq
        %v622 = vshrl.u32 %v621, 7
        %v623 = vsub.s32 %v620, %v622
        %v624 = vrot.slane %v617, %v623
        %v626 = vsel %vm588, %v624, 0.0
        %s627 = sld [smem:[#allocation6 + $0x5]]
        %v628 = vstv %s627
        %v629 = vmul.f32 %v628, %v607
        %v630 = vadd.f32 %v573, %v629
        %s631 = sld [smem:[#allocation6 + $0xe]]
        %v632 = vstv %s631
        %v633 = vmul.f32 %v632, %v626
        %v634 = vadd.f32 %v630, %v633
        %635 = vrot.lane.b32.xlu0 %v247, 113
        %v636 = vpop.permute.xlu0 %635
        %637 = vrot.lane.b32.xlu0 %v248, 113
        %v638 = vpop.permute.xlu0 %637
        %vm639 = vcmp.lt.s32.totalorder %v270, 113
        %v640 = vsel %vm639, %v636, %v638
        %v641 = vsel %vm639, %v638, %v636
        %642 = vrot.lane.b32.xlu0 %v255, 113
        %v643 = vpop.permute.xlu0 %642
        %644 = vrot.lane.b32.xlu0 %v262, 113
        %v645 = vpop.permute.xlu0 %644
        %v646 = vsel %vm639, %v643, %v645
        %v647 = vsel %vm639, %v645, %v643
        %v648 = vadd.s32 %v263, 1
        %vm649 = vcmp.ge.s32.totalorder %v648, 0
        %vm650 = vcmp.lt.s32.totalorder %v648, 16
        %vm651 = vmand %vm649, %vm650
        %vm652 = vmand %vm651, %vm285
        %vm653 = vmand %vm652, %vm287
        %v656 = vcombine.low %v640, %v641
        %v658 = vunpack.c.l.s4 1966171168
        %v659 = vunpack.c.0.s8 %v658
        %v660 = vlaneseq
        %v661 = vshrl.u32 %v660, 7
        %v662 = vsub.s32 %v659, %v661
        %v663 = vrot.slane %v656, %v662
        %v665 = vunpack.c.l.s4 1966171168
        %v666 = vunpack.c.0.s8 %v665
        %v667 = vlaneseq
        %v668 = vshrl.u32 %v667, 7
        %v669 = vsub.s32 %v666, %v668
        %v670 = vrot.slane %v663, %v669
        %v672 = vsel %vm653, %v670, 0.0
        %v675 = vcombine.low %v646, %v647
        %v677 = vunpack.c.l.s4 1966171168
        %v678 = vunpack.c.0.s8 %v677
        %v679 = vlaneseq
        %v680 = vshrl.u32 %v679, 7
        %v681 = vsub.s32 %v678, %v680
        %v682 = vrot.slane %v675, %v681
        %v684 = vunpack.c.l.s4 1966171168
        %v685 = vunpack.c.0.s8 %v684
        %v686 = vlaneseq
        %v687 = vshrl.u32 %v686, 7
        %v688 = vsub.s32 %v685, %v687
        %v689 = vrot.slane %v682, %v688
        %v691 = vsel %vm653, %v689, 0.0
        %s692 = sld [smem:[#allocation6 + $0x6]]
        %v693 = vstv %s692
        %v694 = vmul.f32 %v693, %v672
        %v695 = vadd.f32 %v634, %v694
        %s696 = sld [smem:[#allocation6 + $0xf]]
        %v697 = vstv %s696
        %v698 = vmul.f32 %v697, %v691
        %v699 = vadd.f32 %v695, %v698
        %700 = vrot.lane.b32.xlu0 %v247, 112
        %v701 = vpop.permute.xlu0 %700
        %702 = vrot.lane.b32.xlu0 %v248, 112
        %v703 = vpop.permute.xlu0 %702
        %vm704 = vcmp.lt.s32.totalorder %v270, 112
        %v705 = vsel %vm704, %v701, %v703
        %v706 = vsel %vm704, %v703, %v701
        %707 = vrot.lane.b32.xlu0 %v255, 112
        %v708 = vpop.permute.xlu0 %707
        %709 = vrot.lane.b32.xlu0 %v262, 112
        %v710 = vpop.permute.xlu0 %709
        %v711 = vsel %vm704, %v708, %v710
        %v712 = vsel %vm704, %v710, %v708
        %vm713 = vmand %vm651, %vm348
        %vm714 = vmand %vm713, %vm350
        %v717 = vcombine.low %v705, %v706
        %v719 = vunpack.c.l.s4 1966171168
        %v720 = vunpack.c.0.s8 %v719
        %v721 = vlaneseq
        %v722 = vshrl.u32 %v721, 7
        %v723 = vsub.s32 %v720, %v722
        %v724 = vrot.slane %v717, %v723
        %v726 = vunpack.c.l.s4 1966171168
        %v727 = vunpack.c.0.s8 %v726
        %v728 = vlaneseq
        %v729 = vshrl.u32 %v728, 7
        %v730 = vsub.s32 %v727, %v729
        %v731 = vrot.slane %v724, %v730
        %v733 = vsel %vm714, %v731, 0.0
        %v736 = vcombine.low %v711, %v712
        %v738 = vunpack.c.l.s4 1966171168
        %v739 = vunpack.c.0.s8 %v738
        %v740 = vlaneseq
        %v741 = vshrl.u32 %v740, 7
        %v742 = vsub.s32 %v739, %v741
        %v743 = vrot.slane %v736, %v742
        %v745 = vunpack.c.l.s4 1966171168
        %v746 = vunpack.c.0.s8 %v745
        %v747 = vlaneseq
        %v748 = vshrl.u32 %v747, 7
        %v749 = vsub.s32 %v746, %v748
        %v750 = vrot.slane %v743, %v749
        %v752 = vsel %vm714, %v750, 0.0
        %s753 = sld [smem:[#allocation6 + $0x7]]
        %v754 = vstv %s753
        %v755 = vmul.f32 %v754, %v733
        %v756 = vadd.f32 %v699, %v755
        %s757 = sld [smem:[#allocation6 + $0x10]]
        %v758 = vstv %s757
        %v759 = vmul.f32 %v758, %v752
        %v760 = vadd.f32 %v756, %v759
        %761 = vrot.lane.b32.xlu0 %v247, 111
        %v762 = vpop.permute.xlu0 %761
        %763 = vrot.lane.b32.xlu0 %v248, 111
        %v764 = vpop.permute.xlu0 %763
        %vm765 = vcmp.lt.s32.totalorder %v270, 111
        %v766 = vsel %vm765, %v762, %v764
        %v767 = vsel %vm765, %v764, %v762
        %768 = vrot.lane.b32.xlu0 %v255, 111
        %v769 = vpop.permute.xlu0 %768
        %770 = vrot.lane.b32.xlu0 %v262, 111
        %v771 = vpop.permute.xlu0 %770
        %v772 = vsel %vm765, %v769, %v771
        %v773 = vsel %vm765, %v771, %v769
        %vm774 = vmand %vm651, %vm412
        %vm775 = vmand %vm774, %vm414
        %v778 = vcombine.low %v766, %v767
        %v780 = vunpack.c.l.s4 1966171168
        %v781 = vunpack.c.0.s8 %v780
        %v782 = vlaneseq
        %v783 = vshrl.u32 %v782, 7
        %v784 = vsub.s32 %v781, %v783
        %v785 = vrot.slane %v778, %v784
        %v787 = vunpack.c.l.s4 1966171168
        %v788 = vunpack.c.0.s8 %v787
        %v789 = vlaneseq
        %v790 = vshrl.u32 %v789, 7
        %v791 = vsub.s32 %v788, %v790
        %v792 = vrot.slane %v785, %v791
        %v794 = vsel %vm775, %v792, 0.0
        %v797 = vcombine.low %v772, %v773
        %v799 = vunpack.c.l.s4 1966171168
        %v800 = vunpack.c.0.s8 %v799
        %v801 = vlaneseq
        %v802 = vshrl.u32 %v801, 7
        %v803 = vsub.s32 %v800, %v802
        %v804 = vrot.slane %v797, %v803
        %v806 = vunpack.c.l.s4 1966171168
        %v807 = vunpack.c.0.s8 %v806
        %v808 = vlaneseq
        %v809 = vshrl.u32 %v808, 7
        %v810 = vsub.s32 %v807, %v809
        %v811 = vrot.slane %v804, %v810
        %v813 = vsel %vm775, %v811, 0.0
        %s814 = sld [smem:[#allocation6 + $0x8]]
        %v815 = vstv %s814
        %v816 = vmul.f32 %v815, %v794
        %v817 = vadd.f32 %v760, %v816
        %s818 = sld [smem:[#allocation6 + $0x11]]
        %v819 = vstv %s818
        %v820 = vmul.f32 %v819, %v813
        %v821 = vadd.f32 %v817, %v820
        %v822 = vxor.u32 %v821, 2147483648
        %v823 = vmul.f32 %v822, 1.442695
        %v824 = vpow.pop %v823
        %v825 = vadd.f32 %v824, 1.0
        %v826 = vrcp.pop %v825
        %v827 = vmul.f32 1.0, %v826
        %v828 = vlaneseq
        %vm829 = vcmp.ge.s32.totalorder %v828, 0
        %vm830 = vcmp.lt.s32.totalorder %v828, 256
        %vm831 = vmand %vm829, %vm830
        %832 = vst.msk [vmem:[%s227] sm:$0x3] %vm831, %v827
        %s833 = sand.u32 %s119, 1
        %s834 = scalar_lea.sflag [#allocation4], %s833
        %s835 = sand.u32 %s119, 1
        %s836 = smul.addr %s835, 2
        %s837 = scalar_lea.vmem [#allocation7], %s836
        // Predicated region
        $region45: #{tpu_custom_call.1} parent=35 // pred_check
          %p838 = pneg %p129
        $region46: #{tpu_custom_call.1} parent=35 // pred_check_branch
          %840 = sbr.rel (%p838) target = $region48
        $region47: #{tpu_custom_call.1} parent=35 // pred_region
          %s842 = ssub.s32 32, 32
          %843 = vsyncadd %s834, %s842
          %s844 = smul.addr %s22, 2
          %s845 = smul.addr %s844, 16
          %s846 = scalar_lea.hbm %s4, %s845
          %s848 = sshll.u32 %s837, 4
          %s849 = int_to_ptr.vmem [resolvable:$true] %s848
          %851 = dma.vmem_to_hbm [thread:$0]  %s849, 32, %s846, %s834
        $region48: #{tpu_custom_call.1} parent=35 // pred_fallthru
          _
      $region36: #{tpu_custom_call.1} parent=5 // pred_fallthru
        _
      %p852 = scmp.le.s32.totalorder 2, %s17
      // Predicated region
      $region49: #{tpu_custom_call.1} parent=5 // pred_check
        %p853 = pneg %p852
      $region50: #{tpu_custom_call.1} parent=5 // pred_check_branch
        %855 = sbr.rel (%p853) target = $region52
      $region51: #{tpu_custom_call.1} parent=5 // pred_region
        %s856 = ssub.s32 %s17, 2
        // Predicated region
        $region53: #{tpu_custom_call.1} parent=51 // pred_check
          %p857 = pneg %p135
        $region54: #{tpu_custom_call.1} parent=51 // pred_check_branch
          %859 = sbr.rel (%p857) target = $region56
        $region55: #{tpu_custom_call.1} parent=51 // pred_region
          %s860 = sand.u32 %s120, 1
          %s861 = scalar_lea.sflag [#allocation4], %s860
          %s862 = sand.u32 %s120, 1
          %s863 = smul.addr %s862, 2
          %s864 = scalar_lea.vmem [#allocation7], %s863
          %865 = dma.done %s861, 32
        $region56: #{tpu_custom_call.1} parent=51 // pred_fallthru
          _
      $region52: #{tpu_custom_call.1} parent=5 // pred_fallthru
        _
    $region6: #{tpu_custom_call.1} parent=1 // loop_footer
      %s21 = sadd.s32 1, %s17
    $region7: #{tpu_custom_call.1} parent=1 // loop_footer_branch
      %16 = sbr.rel target = $region3
    $region8: #{tpu_custom_call.1} parent=1 // loop_exit
      _
    %866 = vsyncpa [#allocation3], 1
    %s867 = scalar_lea.sflag [#allocation3], 1
    %868 = vsyncpa %s867, 1
    %869 = vsyncpa [#allocation4], 1
    %s870 = scalar_lea.sflag [#allocation4], 1
    %871 = vsyncpa %s870, 1
    %872 = vsyncpa [#allocation5], 1
    %s873 = scalar_lea.sflag [#allocation5], 1
    %874 = vsyncpa %s873, 1

</llo_original>
